<compile_context>
chip_gen: v7x
topology: tpu7x:2x2x1
jax: 0.10.0
libtpu: 0.0.40
codegen_flags: <defaults>
</compile_context>

<pallas_src>
import jax
import jax.numpy as jnp
from jax.experimental import pallas as pl
from jax.experimental.pallas import tpu as pltpu

_LANES = 128          # lane-dense width used for the MXU matmul
_OUT = 8              # stored output lanes (3 real actions + 5 padded)
_NEG_BIG = -1e30      # "minus infinity" for padded action lanes (avoids -inf NaNs)


def actor_kernel(z_ref, w_ref, b_ref, probs_ref):
    # fc(z): [TB, D] @ [D, 128] + bias, f32 accumulation on the MXU.
    logits = jnp.dot(z_ref[...], w_ref[...],
                     preferred_element_type=jnp.float32) + b_ref[...]
    # Work only on the first 8 lanes (3 real actions, 5 lanes biased to -1e30):
    # cheaper cross-lane reductions and a 16x narrower output store.
    lg = logits[:, :_OUT]
    m = jnp.max(lg, axis=1, keepdims=True)
    e = jnp.exp(lg - m)                      # padded lanes underflow to exactly 0
    denom = jnp.sum(e, axis=1, keepdims=True)
    # Exact divide (not the approximate reciprocal) so probabilities match the
    # f32 reference to ~1e-6 and rows sum to 1.
    probs_ref[...] = (e / denom).astype(probs_ref.dtype)


def _round_up8(n):
    return max(8, ((n + 7) // 8) * 8)


def _vmem_tile_budget_bytes():
    """Per-generation budget for double-buffered tiles (conservative fallback)."""
    try:
        cap = pltpu.get_tpu_info().vmem_capacity_bytes
        return int(min(cap // 4, 24 * 1024 * 1024))
    except Exception:
        return 12 * 1024 * 1024


def _choose_tb(B, D, in_itemsize):
    """Large batch tile: multiple of 8, VMEM-safe, no pointless grid splits."""
    budget = _vmem_tile_budget_bytes()
    # Per grid step (double-buffered): (tb, D) input tile + (tb, 8) f32 output tile.
    bytes_per_row = 2 * (D * in_itemsize + _OUT * 4)
    max_rows = max(8, budget // bytes_per_row)
    tb = min(8192, max_rows, _round_up8(B))
    # Split only when each half-tile is still >= 1024 rows: gives v7x's two
    # TensorCores useful work without shrinking tiles on single-TC v5e/v6e.
    if B >= 2048:
        tb = min(tb, _round_up8(-(-B // 2)))
    return max(8, (tb // 8) * 8)


def actor_forward(z, w, b, *, tb=None, small_batch_fastpath=256,
                  compute_dtype=jnp.float32):
    """Categorical probabilities for the Actor head.

    z : (B, D) float32 latent          (PyTorch nn.Linear input layout)
    w : (A, D) float32 Linear weight   (PyTorch layout: (out_features, in_features))
    b : (A,)   float32 Linear bias
    Returns (B, A) float32 softmax probabilities (rows sum to 1).
    """
    B, D = z.shape
    A = w.shape[0]
    assert A <= _OUT

    if B < small_batch_fastpath:
        # Tiny batches: one fused XLA pass beats kernel launch + padded-weight
        # construction + post-slice.
        logits = z.astype(jnp.float32) @ w.T.astype(jnp.float32) + b.astype(jnp.float32)
        return jax.nn.softmax(logits, axis=1)

    # Optionally feed bf16 activations/weights (f32 MXU accumulation) to halve
    # the dominant HBM read; default stays f32 to match the PyTorch module.
    z_in = z.astype(compute_dtype)
    in_itemsize = jnp.dtype(compute_dtype).itemsize
    if tb is None:
        tb = _choose_tb(B, D, in_itemsize)
    n_steps = pl.cdiv(B, tb)   # ragged last block handled by Pallas (no host pad)

    # Lane-dense padded parameters: real actions in lanes [0, A); padding weight
    # columns are 0 and padding biases are -1e30 (=> exactly zero probability).
    w_pad = jnp.zeros((D, _LANES), compute_dtype).at[:, :A].set(
        w.T.astype(compute_dtype))
    b_pad = jnp.full((1, _LANES), _NEG_BIG, jnp.float32).at[0, :A].set(
        b.astype(jnp.float32))

    # Explicit scoped-VMEM limit sized to the tiles actually used (with margin),
    # never below the default and well under v7x's 64 MiB physical VMEM.
    vmem_need = (2 * tb * D * in_itemsize + 2 * tb * _OUT * 4
                 + 2 * D * _LANES * in_itemsize + 2 * _LANES * 4)
    vmem_limit = int(min(max(int(vmem_need * 1.5), 16 * 1024 * 1024),
                         48 * 1024 * 1024))

    probs8 = pl.pallas_call(
        actor_kernel,
        out_shape=jax.ShapeDtypeStruct((B, _OUT), jnp.float32),
        grid_spec=pltpu.PrefetchScalarGridSpec(
            num_scalar_prefetch=0,
            grid=(n_steps,),
            in_specs=[
                pl.BlockSpec((tb, D), lambda i: (i, 0)),        # z batch tile
                pl.BlockSpec((D, _LANES), lambda i: (0, 0)),    # padded weight (resident)
                pl.BlockSpec((1, _LANES), lambda i: (0, 0)),    # padded bias (resident)
            ],
            out_specs=pl.BlockSpec((tb, _OUT), lambda i: (i, 0)),
        ),
        compiler_params=pltpu.CompilerParams(
            dimension_semantics=("parallel",),
            vmem_limit_bytes=vmem_limit),
    )(z_in, w_pad, b_pad)

    # Strip the 5 fake action lanes (tiny: 32 B/row instead of 512 B/row).
    return probs8[:, :A]


if __name__ == "__main__":
    # Small shapes consistent with the module: latent_dim=32, 3 actions, batch=8.
    B, D, A = 8, 32, 3

    key = jax.random.PRNGKey(0)
    k_z, k_w, k_b = jax.random.split(key, 3)

    z = jax.random.normal(k_z, (B, D), dtype=jnp.float32)
    w = jax.random.normal(k_w, (A, D), dtype=jnp.float32) * 0.1   # torch (out, in)
    b = jax.random.normal(k_b, (A,), dtype=jnp.float32) * 0.1

    # Force the Pallas kernel path (the auto small-batch fast path would
    # otherwise bypass it at B=8).
    probs = jax.block_until_ready(actor_forward(z, w, b, small_batch_fastpath=0))

    # Reference: fc + softmax(dim=1) in plain JAX (f32).
    probs_ref = jax.nn.softmax(z @ w.T + b, axis=1)
    assert probs.shape == (B, A)
    assert jnp.allclose(probs, probs_ref, atol=3e-3, rtol=1e-3), \
        float(jnp.max(jnp.abs(probs - probs_ref)))
    # Exact divide => rows sum to 1 to f32 accuracy.
    assert jnp.allclose(jnp.sum(probs, axis=1), 1.0, atol=1e-5)

    # Larger ragged batch: exercises the pad-free cdiv grid / overhanging block.
    Bl = 1003
    zl = jax.random.normal(jax.random.PRNGKey(1), (Bl, D), dtype=jnp.float32)
    probs_l = jax.block_until_ready(actor_forward(zl, w, b))
    probs_l_ref = jax.nn.softmax(zl @ w.T + b, axis=1)
    assert probs_l.shape == (Bl, A)
    assert jnp.allclose(probs_l, probs_l_ref, atol=3e-3, rtol=1e-3)
    assert jnp.allclose(jnp.sum(probs_l, axis=1), 1.0, atol=1e-5)

    # Small-batch fast path (plain XLA) sanity check.
    probs_fast = jax.block_until_ready(actor_forward(z, w, b))
    assert jnp.allclose(probs_fast, probs_ref, atol=1e-5, rtol=1e-5)

    # TODO(synk): torch.distributions.Categorical (sampling / log_prob) is
    # host-side distribution bookkeeping, not a tensor op; the kernel returns
    # the probability table that parameterizes it.
    print("KERNEL_OK")
</pallas_src>

<mosaic_0001>
module attributes {stable_mosaic.version = 11 : i64} {
  func.func @actor_kernel(%arg0: i32, %arg1: memref<8x32xf32, #tpu.memory_space<vmem>>, %arg2: memref<32x128xf32, #tpu.memory_space<vmem>>, %arg3: memref<1x128xf32, #tpu.memory_space<vmem>>, %arg4: memref<8x8xf32, #tpu.memory_space<vmem>>) attributes {dimension_semantics = [#tpu.dimension_semantics<parallel>], iteration_bounds = array<i64: 1>, scalar_prefetch = 0 : i64, scratch_operands = 0 : i64, tpu.core_type = #tpu.core_type<tc>, window_params = [{transform_indices = @transform_0, window_bounds = array<i64: 8, 32>}, {pipeline_mode = #tpu.pipeline_mode<synchronous>, transform_indices = @transform_1, window_bounds = array<i64: 32, 128>}, {pipeline_mode = #tpu.pipeline_mode<synchronous>, transform_indices = @transform_2, window_bounds = array<i64: 1, 128>}, {transform_indices = @transform_3, window_bounds = array<i64: 8, 8>}]} {
    %c0 = arith.constant 0 : index
    %c0_0 = arith.constant 0 : index
    %0 = vector.load %arg1[%c0, %c0_0] : memref<8x32xf32, #tpu.memory_space<vmem>>, vector<8x32xf32>
    %c0_1 = arith.constant 0 : index
    %c0_2 = arith.constant 0 : index
    %1 = vector.load %arg2[%c0_1, %c0_2] : memref<32x128xf32, #tpu.memory_space<vmem>>, vector<32x128xf32>
    %cst = arith.constant dense<0.000000e+00> : vector<8x128xf32>
    %2 = tpu.matmul %0, %1, %cst {dimension_numbers = #tpu.dot_dimension_numbers<[1], [0], [0], [1], [0, 0, 1, 1], [], []>} : vector<8x32xf32>, vector<32x128xf32>, vector<8x128xf32> -> vector<8x128xf32>
    %c0_3 = arith.constant 0 : index
    %c0_4 = arith.constant 0 : index
    %3 = vector.load %arg3[%c0_3, %c0_4] : memref<1x128xf32, #tpu.memory_space<vmem>>, vector<1x128xf32>
    %4 = vector.broadcast %3 : vector<1x128xf32> to vector<8x128xf32>
    %5 = arith.addf %2, %4 : vector<8x128xf32>
    %6 = vector.extract_strided_slice %5 {offsets = [0, 0], sizes = [8, 8], strides = [1, 1]} : vector<8x128xf32> to vector<8x8xf32>
    %cst_5 = arith.constant dense<0xFF800000> : vector<8xf32>
    %7 = vector.multi_reduction <maximumf>, %6, %cst_5 [1] : vector<8x8xf32> to vector<8xf32>
    %8 = vector.shape_cast %7 : vector<8xf32> to vector<8x1xf32>
    %9 = vector.broadcast %8 : vector<8x1xf32> to vector<8x8xf32>
    %10 = arith.subf %6, %9 : vector<8x8xf32>
    %11 = math.exp %10 : vector<8x8xf32>
    %cst_6 = arith.constant dense<0.000000e+00> : vector<8xf32>
    %12 = vector.multi_reduction <add>, %11, %cst_6 [1] : vector<8x8xf32> to vector<8xf32>
    %13 = vector.shape_cast %12 : vector<8xf32> to vector<8x1xf32>
    %14 = vector.broadcast %13 : vector<8x1xf32> to vector<8x8xf32>
    %15 = arith.divf %11, %14 : vector<8x8xf32>
    %c0_7 = arith.constant 0 : index
    %c0_8 = arith.constant 0 : index
    %16 = vector.load %arg4[%c0_7, %c0_8] : memref<8x8xf32, #tpu.memory_space<vmem>>, vector<8x8xf32>
    tpu.vector_store %arg4[%c0_7, %c0_8], %15 {strides = array<i32>} : memref<8x8xf32, #tpu.memory_space<vmem>>, vector<8x8xf32>,
    return
  }
  func.func @transform_0(%arg0: i32) -> (i32, i32) {
    %c0_i32 = arith.constant 0 : i32
    %c0_i32_0 = arith.constant 0 : i32
    return %arg0, %c0_i32 : i32, i32
  }
  func.func @transform_1(%arg0: i32) -> (i32, i32) {
    %c0_i32 = arith.constant 0 : i32
    %c0_i32_0 = arith.constant 0 : i32
    %c0_i32_1 = arith.constant 0 : i32
    return %c0_i32, %c0_i32_0 : i32, i32
  }
  func.func @transform_2(%arg0: i32) -> (i32, i32) {
    %c0_i32 = arith.constant 0 : i32
    %c0_i32_0 = arith.constant 0 : i32
    %c0_i32_1 = arith.constant 0 : i32
    return %c0_i32, %c0_i32_0 : i32, i32
  }
  func.func @transform_3(%arg0: i32) -> (i32, i32) {
    %c0_i32 = arith.constant 0 : i32
    %c0_i32_0 = arith.constant 0 : i32
    return %arg0, %c0_i32 : i32, i32
  }
}

</mosaic_0001>

<llo_original>
// kernel: tpu_custom_call.1
$region0: #{tpu_custom_call.1}
  #allocation0 [shape = 'u32[]', space=smem, size = 0x4, offset = 0x4, fixed_abs, tag = 'smem constant byte address 0x4 - core index']
  #allocation1 [shape = 'u32[144,128]{1,0:T(1,128)}', space=vmem, size = 0x12000, scoped, tag = 'internal scratch']
  %s0 = inlined_call_operand.hbm [shape: f32[8,32], index: 0, kind: input, shape index: {}]
  %s1 = inlined_call_operand.hbm [shape: f32[32,128], index: 1, kind: input, shape index: {}]
  %s2 = inlined_call_operand.vmem [shape: f32[1,128], index: 2, kind: input, shape index: {}]
  %s3 = inlined_call_operand.hbm [shape: f32[8,8], index: 3, kind: output, shape index: {}]
  %s4 = sld [smem:[#allocation0]]
  $region30: #{tpu_custom_call.1} parent=0
    _
  %s6 = ssub.s32 1, %s4
  %s7 = scalar_select 0, %s6, %s4
  $region1: #{tpu_custom_call.1} parent=0
    #allocation2 [shape = 'u8[4096]{0}', space=vmem, size = 0x1000, scoped, tag = 'input window, operand 0, single buffered']
    #allocation3 [shape = 's32[1]{0}', space=sflag, size = 0x4, scoped, tag = 'scoped memory for tpu_custom_call.1']
    #allocation4 [shape = 's32[1]{0}', space=sflag, size = 0x4, scoped, tag = 'scoped memory for tpu_custom_call.1']
    #allocation5 [shape = 'u8[16384]{0}', space=vmem, size = 0x4000, scoped, tag = 'input window, operand 1, single buffered']
    #allocation6 [shape = 's32[1]{0}', space=sflag, size = 0x4, scoped, tag = 'scoped memory for tpu_custom_call.1']
    #allocation7 [shape = 'u8[4096]{0}', space=vmem, size = 0x1000, scoped, tag = 'output window, operand 0, single buffered']
    %8 = vsyncpa [#allocation3], 0
    %9 = vsyncpa [#allocation6], 0
    %10 = vsyncpa [#allocation4], 0
    // Predicated region
    $region2: #{tpu_custom_call.1} parent=1 // pred_check
      _
    $region3: #{tpu_custom_call.1} parent=1 // pred_check_branch
      %12 = sbr.rel (0) target = $region5
    $region4: #{tpu_custom_call.1} parent=1 // pred_region
      %s14 = ssub.s32 128, 128
      %15 = vsyncadd [#allocation3], %s14
      %s17 = sshll.u32 [#allocation2], 4
      %s18 = int_to_ptr.vmem [resolvable:$true] %s17
      %20 = dma.hbm_to_vmem [thread:$0]  %s0, 128, %s18, [#allocation3]
    $region5: #{tpu_custom_call.1} parent=1 // pred_fallthru
      _
    // Predicated region
    $region6: #{tpu_custom_call.1} parent=1 // pred_check
      _
    $region7: #{tpu_custom_call.1} parent=1 // pred_check_branch
      %22 = sbr.rel (0) target = $region9
    $region8: #{tpu_custom_call.1} parent=1 // pred_region
      %s24 = ssub.s32 512, 512
      %25 = vsyncadd [#allocation6], %s24
      %s26 = sshll.u32 [#allocation5], 4
      %s27 = int_to_ptr.vmem [resolvable:$true] %s26
      %32 = dma.hbm_to_vmem [thread:$0]  %s1, 512, %s27, [#allocation6], 128, 128, 8
    $region9: #{tpu_custom_call.1} parent=1 // pred_fallthru
      _
    // Predicated region
    $region10: #{tpu_custom_call.1} parent=1 // pred_check
      _
    $region11: #{tpu_custom_call.1} parent=1 // pred_check_branch
      %34 = sbr.rel (0) target = $region13
    $region12: #{tpu_custom_call.1} parent=1 // pred_region
      _
    $region13: #{tpu_custom_call.1} parent=1 // pred_fallthru
      _
    // Predicated region
    $region14: #{tpu_custom_call.1} parent=1 // pred_check
      _
    $region15: #{tpu_custom_call.1} parent=1 // pred_check_branch
      %36 = sbr.rel (0) target = $region17
    $region16: #{tpu_custom_call.1} parent=1 // pred_region
      %37 = dma.done [#allocation3], 128
    $region17: #{tpu_custom_call.1} parent=1 // pred_fallthru
      _
    // Predicated region
    $region18: #{tpu_custom_call.1} parent=1 // pred_check
      _
    $region19: #{tpu_custom_call.1} parent=1 // pred_check_branch
      %39 = sbr.rel (0) target = $region21
    $region20: #{tpu_custom_call.1} parent=1 // pred_region
      %40 = dma.done [#allocation6], 512
    $region21: #{tpu_custom_call.1} parent=1 // pred_fallthru
      _
    %v41 = vld [vmem:[#allocation2] sm:$0xff]
    %v42 = vld [vmem:[#allocation5] sm:$0xff]
    %v43 = vld [vmem:[#allocation5 + $0x8] sm:$0xff]
    %v44 = vld [vmem:[#allocation5 + $0x10] sm:$0xff]
    %v45 = vld [vmem:[#allocation5 + $0x18] sm:$0xff]
    %v46 = vld [vmem:[%s2] sm:$0x1]
    %v48 = vlaneseq
    %v49 = vshrl.u32 %v48, 7
    %v50 = vsub.s32 0, %v49
    %v51 = vrot.slane %v46, %v50
    %vm53 = vcmask 261120
    %v55 = vsel %vm53, %v41, 0
    %57 = vmatprep.subr.mxu0 0.0
    %58 = vmatpush1.msra.mxu0 %v42
    %59 = vmatprep.subr.mxu0 0.0
    %60 = vmatpush1.msra.mxu0 %v43
    %61 = vmatprep.subr.mxu0 0.0
    %62 = vmatpush1.msra.mxu0 %v44
    %63 = vmatprep.subr.mxu0 0.0
    %64 = vmatpush1.msra.mxu0 %v45
    %65 = vmatprep.subr.mxu0 0.0
    %66 = vmatpush1.msra.mxu0 0.0
    %67 = vmatprep.subr.mxu0 0.0
    %68 = vmatpush1.msra.mxu0 0.0
    %69 = vmatprep.subr.mxu0 0.0
    %70 = vmatpush1.msra.mxu0 0.0
    %71 = vmatprep.subr.mxu0 0.0
    %72 = vmatpush1.msra.mxu0 0.0
    %73 = vmatprep.subr.mxu0 0.0
    %74 = vmatpush1.msra.mxu0 0.0
    %75 = vmatprep.subr.mxu0 0.0
    %76 = vmatpush1.msra.mxu0 0.0
    %77 = vmatprep.subr.mxu0 0.0
    %78 = vmatpush1.msra.mxu0 0.0
    %79 = vmatprep.subr.mxu0 0.0
    %80 = vmatpush1.msra.mxu0 0.0
    %81 = vmatprep.subr.mxu0 0.0
    %82 = vmatpush1.msra.mxu0 0.0
    %83 = vmatprep.subr.mxu0 0.0
    %84 = vmatpush1.msra.mxu0 0.0
    %85 = vmatprep.subr.mxu0 0.0
    %86 = vmatpush1.msra.mxu0 0.0
    %87 = vmatprep.subr.mxu0 0.0
    %88 = vmatpush1.msra.mxu0 0.0
    %89 = vmatprep.subr.mxu0 0.0
    %90 = vmatpush1.msra.mxu0 0.0
    %91 = vmatprep.subr.mxu0 0.0
    %92 = vmatpush1.msra.mxu0 0.0
    %93 = vmatprep.subr.mxu0 0.0
    %94 = vmatpush1.msra.mxu0 0.0
    %95 = vmatprep.subr.mxu0 0.0
    %96 = vmatpush1.msra.mxu0 0.0
    %97 = vmatprep.subr.mxu0 0.0
    %98 = vmatpush1.msra.mxu0 0.0
    %99 = vmatprep.subr.mxu0 0.0
    %100 = vmatpush1.msra.mxu0 0.0
    %101 = vmatprep.subr.mxu0 0.0
    %102 = vmatpush1.msra.mxu0 0.0
    %103 = vmatprep.subr.mxu0 0.0
    %104 = vmatpush1.msra.mxu0 0.0
    %105 = vmatprep.subr.mxu0 0.0
    %106 = vmatpush1.msra.mxu0 0.0
    %107 = vmatprep.subr.mxu0 0.0
    %108 = vmatpush1.msra.mxu0 0.0
    %109 = vmatprep.subr.mxu0 0.0
    %110 = vmatpush1.msra.mxu0 0.0
    %111 = vmatprep.subr.mxu0 0.0
    %112 = vmatpush1.msra.mxu0 0.0
    %113 = vmatprep.subr.mxu0 0.0
    %114 = vmatpush1.msra.mxu0 0.0
    %115 = vmatprep.subr.mxu0 0.0
    %116 = vmatpush1.msra.mxu0 0.0
    %117 = vmatprep.subr.mxu0 0.0
    %118 = vmatpush1.msra.mxu0 0.0
    %119 = vmatprep.subr.mxu0 0.0
    %120 = vmatpush1.msra.mxu0 0.0
    %121 = vmatprep.mubr.f32.mxu0 0.0
    %122 = vmatmul.mubr.f32.gmra.mrb[0].mxu0 %v55
    %v123 = vpop.f32.mrb[0].mxu0
    %v124 = vadd.f32 %v51, %v123
    %v125 = vpop.f32.mrb[0].mxu0
    %126 = vdwg.mxu0
    %vm127 = vcmask 64512
    %v128 = vsel %vm127, %v124, -inf
    %129 = vmax.xlane.f32.xlu0 %v128
    %v130 = vpop.xlane.xlu0 %129
    %v131 = vsub.f32 %v124, %v130
    %v132 = vmul.f32 %v131, 1.442695
    %v133 = vpow.pop %v132
    %v134 = vsel %vm127, %v133, 0.0
    %135 = vadd.xlane.f32.xlu0 %v134
    %v136 = vpop.xlane.xlu0 %135
    %v137 = vrcp.pop %v136
    %v138 = vmul.f32 %v133, %v137
    %139 = vst.msk [vmem:[#allocation7] sm:$0xff] %vm127, %v138
    // Predicated region
    $region22: #{tpu_custom_call.1} parent=1 // pred_check
      _
    $region23: #{tpu_custom_call.1} parent=1 // pred_check_branch
      %141 = sbr.rel (0) target = $region25
    $region24: #{tpu_custom_call.1} parent=1 // pred_region
      %s143 = ssub.s32 128, 128
      %144 = vsyncadd [#allocation4], %s143
      %s146 = sshll.u32 [#allocation7], 4
      %s147 = int_to_ptr.vmem [resolvable:$true] %s146
      %149 = dma.vmem_to_hbm [thread:$0]  %s147, 128, %s3, [#allocation4]
    $region25: #{tpu_custom_call.1} parent=1 // pred_fallthru
      _
    // Predicated region
    $region26: #{tpu_custom_call.1} parent=1 // pred_check
      _
    $region27: #{tpu_custom_call.1} parent=1 // pred_check_branch
      %151 = sbr.rel (0) target = $region29
    $region28: #{tpu_custom_call.1} parent=1 // pred_region
      %152 = dma.done [#allocation4], 128
    $region29: #{tpu_custom_call.1} parent=1 // pred_fallthru
      _
    %153 = vsyncpa [#allocation3], 1
    %154 = vsyncpa [#allocation6], 1
    %155 = vsyncpa [#allocation4], 1

</llo_original>
